<compile_context>
chip_gen: v5e
topology: v5e:2x2
jax: 0.10.0
libtpu: 0.0.40
codegen_flags: <defaults>
</compile_context>

<pallas_src>
import jax
import jax.numpy as jnp
from jax.experimental import pallas as pl
from jax.experimental.pallas import tpu as pltpu


def _linear_sigmoid_kernel(x_ref, w_ref, b_ref, o_ref):
    # x_ref: (TB, IN)  f32 batch tile
    # w_ref: (IN, OUT) f32 pre-transposed weights, resident across the grid
    # b_ref: (1, OUT)  f32 bias, resident across the grid
    # o_ref: (TB, OUT) f32 output tile
    z = jnp.dot(x_ref[...], w_ref[...], preferred_element_type=jnp.float32) + b_ref[...]
    o_ref[...] = jax.nn.sigmoid(z).astype(o_ref.dtype)  # EUP/VPU


def _round_up(v, m):
    return ((v + m - 1) // m) * m


def net_forward(x, w, b, *, tb_max=2048, min_pallas_batch=256):
    """Pallas equivalent of: sigmoid(nn.Linear(16, 2)(x)).

    x: (B, 16) float32
    w: (2, 16) float32   (PyTorch layout: [out_features, in_features])
    b: (2,)    float32
    returns: (B, 2) float32
    """
    B, IN = x.shape
    OUT = w.shape[0]

    w_t = w.T                 # (IN, OUT): K on sublanes, N on lanes
    b_row = b.reshape(1, OUT)

    # Tiny batches: a Pallas launch (plus any padding) cannot beat a single
    # fused XLA op; dispatch overhead is the whole latency story there.
    if B < min_pallas_batch:
        return jax.nn.sigmoid(x @ w_t + b_row)

    # Batch tiling: keep >= 2 grid steps when the batch allows it (v7x has
    # two TensorCores), and round each tile to a multiple of 8 sublanes so
    # padding waste is < 8 rows per block.
    min_blocks = 2 if B >= 16 else 1
    n_blocks = max(-(-B // tb_max), min_blocks)
    tb = _round_up(-(-B // n_blocks), 8)
    B_pad = n_blocks * tb

    if B_pad != B:
        x_in = jnp.zeros((B_pad, IN), x.dtype).at[:B].set(x)
    else:
        x_in = x

    cost = pl.CostEstimate(
        flops=2 * B_pad * IN * OUT,
        transcendentals=B_pad * OUT,
        bytes_accessed=4 * (B_pad * IN + IN * OUT + OUT + B_pad * OUT),
    )

    out = pl.pallas_call(
        _linear_sigmoid_kernel,
        out_shape=jax.ShapeDtypeStruct((B_pad, OUT), jnp.float32),
        grid_spec=pl.GridSpec(
            grid=(n_blocks,),
            in_specs=[
                pl.BlockSpec((tb, IN), lambda i: (i, 0)),    # x: blocked over batch
                pl.BlockSpec((IN, OUT), lambda i: (0, 0)),   # W^T: resident
                pl.BlockSpec((1, OUT), lambda i: (0, 0)),    # bias: resident
            ],
            out_specs=pl.BlockSpec((tb, OUT), lambda i: (i, 0)),
        ),
        compiler_params=pltpu.CompilerParams(
            dimension_semantics=("parallel",),  # shard batch tiles across TCs (v7x)
        ),
        cost_estimate=cost,
    )(x_in, w_t, b_row)

    return out[:B] if B_pad != B else out


if __name__ == "__main__":
    key = jax.random.PRNGKey(0)
    kx, kw, kb, kx2 = jax.random.split(key, 4)

    B, IN, OUT = 8, 16, 2  # fc1 = nn.Linear(16, 2)

    x = jax.random.normal(kx, (B, IN), dtype=jnp.float32)
    # Deterministic params mimicking PyTorch Linear default U[-1/sqrt(in), 1/sqrt(in)]
    bound = 1.0 / jnp.sqrt(jnp.float32(IN))
    w = jax.random.uniform(kw, (OUT, IN), dtype=jnp.float32, minval=-bound, maxval=bound)
    b = jax.random.uniform(kb, (OUT,), dtype=jnp.float32, minval=-bound, maxval=bound)

    ref = jax.nn.sigmoid(x @ w.T + b)

    # Small batch, force the Pallas path (single grid step, tb == 8, no padding).
    out = net_forward(x, w, b, min_pallas_batch=0)
    jax.block_until_ready(out)
    assert out.shape == (B, OUT)
    assert jnp.allclose(out, ref, atol=1e-5, rtol=1e-5)

    # Default dispatch at this batch uses the fused XLA fallback (no Pallas launch).
    out_small = net_forward(x, w, b)
    jax.block_until_ready(out_small)
    assert jnp.allclose(out_small, ref, atol=1e-5, rtol=1e-5)

    # Larger batch: Pallas path, 2 grid steps (both TCs on v7x), <8 rows padding.
    B2 = 600
    x2 = jax.random.normal(kx2, (B2, IN), dtype=jnp.float32)
    out2 = net_forward(x2, w, b)
    jax.block_until_ready(out2)
    ref2 = jax.nn.sigmoid(x2 @ w.T + b)
    assert out2.shape == (B2, OUT)
    assert jnp.allclose(out2, ref2, atol=1e-5, rtol=1e-5)

    print("KERNEL_OK")
</pallas_src>

<mosaic_0001>
module attributes {stable_mosaic.version = 11 : i64} {
  func.func @_linear_sigmoid_kernel(%arg0: i32, %arg1: memref<8x16xf32, #tpu.memory_space<vmem>>, %arg2: memref<16x2xf32, #tpu.memory_space<vmem>>, %arg3: memref<1x2xf32, #tpu.memory_space<vmem>>, %arg4: memref<8x2xf32, #tpu.memory_space<vmem>>) attributes {dimension_semantics = [#tpu.dimension_semantics<parallel>], iteration_bounds = array<i64: 1>, scalar_prefetch = 0 : i64, scratch_operands = 0 : i64, tpu.core_type = #tpu.core_type<tc>, window_params = [{transform_indices = @transform_0, window_bounds = array<i64: 8, 16>}, {pipeline_mode = #tpu.pipeline_mode<synchronous>, transform_indices = @transform_1, window_bounds = array<i64: 16, 2>}, {pipeline_mode = #tpu.pipeline_mode<synchronous>, transform_indices = @transform_2, window_bounds = array<i64: 1, 2>}, {transform_indices = @transform_3, window_bounds = array<i64: 8, 2>}]} {
    %c0 = arith.constant 0 : index
    %c0_0 = arith.constant 0 : index
    %0 = vector.load %arg1[%c0, %c0_0] : memref<8x16xf32, #tpu.memory_space<vmem>>, vector<8x16xf32>
    %c0_1 = arith.constant 0 : index
    %c0_2 = arith.constant 0 : index
    %1 = vector.load %arg2[%c0_1, %c0_2] : memref<16x2xf32, #tpu.memory_space<vmem>>, vector<16x2xf32>
    %cst = arith.constant dense<0.000000e+00> : vector<8x2xf32>
    %2 = tpu.matmul %0, %1, %cst {dimension_numbers = #tpu.dot_dimension_numbers<[1], [0], [0], [1], [0, 0, 1, 1], [], []>} : vector<8x16xf32>, vector<16x2xf32>, vector<8x2xf32> -> vector<8x2xf32>
    %c0_3 = arith.constant 0 : index
    %c0_4 = arith.constant 0 : index
    %3 = vector.load %arg3[%c0_3, %c0_4] : memref<1x2xf32, #tpu.memory_space<vmem>>, vector<1x2xf32>
    %4 = vector.broadcast %3 : vector<1x2xf32> to vector<8x2xf32>
    %5 = arith.addf %2, %4 : vector<8x2xf32>
    %6 = arith.negf %5 : vector<8x2xf32>
    %7 = math.exp %6 : vector<8x2xf32>
    %cst_5 = arith.constant 1.000000e+00 : f32
    %8 = vector.broadcast %cst_5 : f32 to vector<8x2xf32>
    %9 = arith.addf %8, %7 : vector<8x2xf32>
    %10 = arith.divf %8, %9 : vector<8x2xf32>
    %c0_6 = arith.constant 0 : index
    %c0_7 = arith.constant 0 : index
    %11 = vector.load %arg4[%c0_6, %c0_7] : memref<8x2xf32, #tpu.memory_space<vmem>>, vector<8x2xf32>
    tpu.vector_store %arg4[%c0_6, %c0_7], %10 {strides = array<i32>} : memref<8x2xf32, #tpu.memory_space<vmem>>, vector<8x2xf32>,
    return
  }
  func.func @transform_0(%arg0: i32) -> (i32, i32) {
    %c0_i32 = arith.constant 0 : i32
    %c0_i32_0 = arith.constant 0 : i32
    return %arg0, %c0_i32 : i32, i32
  }
  func.func @transform_1(%arg0: i32) -> (i32, i32) {
    %c0_i32 = arith.constant 0 : i32
    %c0_i32_0 = arith.constant 0 : i32
    %c0_i32_1 = arith.constant 0 : i32
    return %c0_i32, %c0_i32_0 : i32, i32
  }
  func.func @transform_2(%arg0: i32) -> (i32, i32) {
    %c0_i32 = arith.constant 0 : i32
    %c0_i32_0 = arith.constant 0 : i32
    %c0_i32_1 = arith.constant 0 : i32
    return %c0_i32, %c0_i32_0 : i32, i32
  }
  func.func @transform_3(%arg0: i32) -> (i32, i32) {
    %c0_i32 = arith.constant 0 : i32
    %c0_i32_0 = arith.constant 0 : i32
    return %arg0, %c0_i32 : i32, i32
  }
}

</mosaic_0001>

<llo_original>
// kernel: tpu_custom_call.1
$region0: #{tpu_custom_call.1}
  #allocation0 [shape = 'u32[]', space=smem, size = 0x4, offset = 0x4, fixed_abs, tag = 'smem constant byte address 0x4 - core index']
  #allocation1 [shape = 'u32[72,128]{1,0:T(1,128)}', space=vmem, size = 0x9000, scoped, tag = 'internal scratch']
  %s0 = inlined_call_operand.vmem [shape: f32[8,16], index: 0, kind: input, shape index: {}]
  %s1 = inlined_call_operand.vmem [shape: f32[16,2], index: 1, kind: input, shape index: {}]
  %s2 = inlined_call_operand.vmem [shape: f32[1,2], index: 2, kind: input, shape index: {}]
  %s3 = inlined_call_operand.vmem [shape: f32[8,2], index: 3, kind: output, shape index: {}]
  %s4 = sld [smem:[#allocation0]]
  $region22: #{tpu_custom_call.1} parent=0
    _
  %s6 = ssub.s32 1, %s4
  %s7 = scalar_select 0, %s6, %s4
  // Predicated region
  $region2: #{tpu_custom_call.1} parent=0 // pred_check
    _
  $region3: #{tpu_custom_call.1} parent=0 // pred_check_branch
    %9 = sbr.rel (0) target = $region5
  $region4: #{tpu_custom_call.1} parent=0 // pred_region
    _
  $region5: #{tpu_custom_call.1} parent=0 // pred_fallthru
    _
  // Predicated region
  $region6: #{tpu_custom_call.1} parent=0 // pred_check
    _
  $region7: #{tpu_custom_call.1} parent=0 // pred_check_branch
    %11 = sbr.rel (0) target = $region9
  $region8: #{tpu_custom_call.1} parent=0 // pred_region
    _
  $region9: #{tpu_custom_call.1} parent=0 // pred_fallthru
    _
  // Predicated region
  $region10: #{tpu_custom_call.1} parent=0 // pred_check
    _
  $region11: #{tpu_custom_call.1} parent=0 // pred_check_branch
    %13 = sbr.rel (0) target = $region13
  $region12: #{tpu_custom_call.1} parent=0 // pred_region
    _
  $region13: #{tpu_custom_call.1} parent=0 // pred_fallthru
    _
  %v14 = vld [vmem:[%s0] sm:$0xff]
  %v15 = vld [vmem:[%s1] sm:$0xff]
  %v16 = vld [vmem:[%s1 + $0x8] sm:$0xff]
  %v17 = vld [vmem:[%s2] sm:$0x1]
  %v19 = vperm.slane %v17, 0
  %vm21 = vcmask 130048
  %v23 = vsel %vm21, %v14, 0
  %25 = vmatpush.msra.mxu0 0.0
  %26 = vmatpush.msra.mxu0 0.0
  %27 = vmatpush.msra.mxu0 0.0
  %28 = vmatpush.msra.mxu0 0.0
  %29 = vmatpush.msra.mxu0 0.0
  %30 = vmatpush.msra.mxu0 0.0
  %31 = vmatpush.msra.mxu0 0.0
  %32 = vmatpush.msra.mxu0 0.0
  %33 = vmatpush.msra.mxu0 0.0
  %34 = vmatpush.msra.mxu0 0.0
  %35 = vmatpush.msra.mxu0 0.0
  %36 = vmatpush.msra.mxu0 0.0
  %37 = vmatpush.msra.mxu0 0.0
  %38 = vmatpush.msra.mxu0 0.0
  %39 = vmatpush.msra.mxu0 %v16
  %40 = vmatpush.msra.mxu0 %v15
  %41 = vmatmul.f32.gmra.mxu0 %v23
  %v42 = vpop.f32.mrf.mxu0
  %v43 = vadd.f32 %v19, %v42
  %44 = vdwg.mxu0
  %v45 = vxor.u32 %v43, 2147483648
  %v46 = vmul.f32 %v45, 1.442695
  %v47 = vpow.pop %v46
  %v48 = vadd.f32 %v47, 1.0
  %v49 = vrcp.pop %v48
  %v50 = vmul.f32 %v48, %v49
  %v51 = vsub.f32 1.0, %v50
  %v52 = vmul.f32 %v49, %v51
  %v53 = vadd.f32 %v49, %v52
  %vm54 = vweird.f32 %v48
  %vm55 = vweird.f32 %v49
  %vm56 = vmor %vm54, %vm55
  %v57 = vsel %vm56, %v49, %v53
  %v58 = vand.u32 2147483647, %v48
  %vm59 = vcmp.eq.f32.partialorder %v58, 8.507059e+37
  %v60 = vand.u32 %v48, 2147483648
  %v61 = vor.u32 1.1754944e-38, %v60
  %v62 = vsel %vm59, %v61, %v57
  %v63 = vmul.f32 1.0, %v62
  %vm64 = vcmask 15360
  %65 = vst.msk [vmem:[%s3] sm:$0xff] %vm64, %v63
  // Predicated region
  $region14: #{tpu_custom_call.1} parent=0 // pred_check
    _
  $region15: #{tpu_custom_call.1} parent=0 // pred_check_branch
    %67 = sbr.rel (0) target = $region17
  $region16: #{tpu_custom_call.1} parent=0 // pred_region
    _
  $region17: #{tpu_custom_call.1} parent=0 // pred_fallthru
    _
  // Predicated region
  $region18: #{tpu_custom_call.1} parent=0 // pred_check
    _
  $region19: #{tpu_custom_call.1} parent=0 // pred_check_branch
    %69 = sbr.rel (0) target = $region21
  $region20: #{tpu_custom_call.1} parent=0 // pred_region
    _
  $region21: #{tpu_custom_call.1} parent=0 // pred_fallthru
    _

</llo_original>
